<compile_context>
chip_gen: v6e
topology: v6e:2x2x1
jax: 0.10.0
libtpu: 0.0.40
codegen_flags: <defaults>
</compile_context>

<pallas_src>
import functools

import jax
import jax.numpy as jnp
from jax.experimental import pallas as pl
from jax.experimental.pallas import tpu as pltpu


def _soft_ce_rows_kernel(x_ref, t_ref, o_ref):
    """Per-sample loss column: o[i,0] = sum_j t_ij * -(log_softmax(x)_ij)."""
    x = x_ref[...].astype(jnp.float32)
    t = t_ref[...]
    m = jnp.max(x, axis=1, keepdims=True)
    s = x - m                                             # shifted logits (reused)
    lse = jnp.log(jnp.sum(jnp.exp(s), axis=1, keepdims=True))
    t_sum = jnp.sum(t, axis=1, keepdims=True, dtype=jnp.float32)
    ts_sum = jnp.sum(t * s, axis=1, keepdims=True)        # f32 via promotion
    o_ref[...] = (lse * t_sum - ts_sum).astype(o_ref.dtype)


def _soft_ce_sum_kernel(x_ref, t_ref, o_ref):
    """Per-block partial sum of the per-sample losses, splatted into (8,128)."""
    x = x_ref[...].astype(jnp.float32)
    t = t_ref[...]
    m = jnp.max(x, axis=1, keepdims=True)
    s = x - m
    lse = jnp.log(jnp.sum(jnp.exp(s), axis=1, keepdims=True))
    t_sum = jnp.sum(t, axis=1, keepdims=True, dtype=jnp.float32)
    # sum_i [ lse_i * tsum_i - sum_j t_ij * s_ij ]
    partial = jnp.sum(lse * t_sum) - jnp.sum(t * s)
    o_ref[...] = jnp.full(o_ref.shape, partial, dtype=o_ref.dtype)


def _round_up(x, m):
    return ((x + m - 1) // m) * m


def _pick_tiling(N, C, x_itemsize, t_itemsize, column_out):
    """Byte-targeted sample tile + a vmem limit that is safe on v5e/v6e/v7x."""
    # VMEM bytes needed per sample row of a tile:
    #   inputs : 2 pipeline buffers x C x (itemsize_x + itemsize_t)
    #   temps  : ~4 live f32 [block_n, C] values (x_f32, x-m, exp(x-m), t*(x-m))
    #   output : (block_n, 1) block lane-pads to 128 lanes, double-buffered
    per_row = C * (2 * (x_itemsize + t_itemsize) + 4 * 4)
    if column_out:
        per_row += 2 * 128 * 4
    target = 24 * 1024 * 1024              # comfortably inside v7x's 64 MiB/TC
    block_n = max(8, (target // per_row) // 8 * 8)
    # Keep >= 4 grid steps when the batch allows: DMA/compute overlap plus
    # megacore ("parallel") sharding on v7x need more than one step.
    cap = max(8, _round_up((N + 3) // 4, 8))
    block_n = min(block_n, cap)

    est = block_n * per_row + (4 << 20)    # + margin for compiler scratch
    vmem_limit = max(32 << 20, min(est, 48 << 20))
    if est > (48 << 20):
        # Giant-C fallback (block_n already at the 8-row floor): allow more
        # scoped VMEM on v5e/v6e rather than fail outright.  The proper fix is
        # the C-axis split (see TODO at top of file).
        vmem_limit = min(est, 100 << 20)
    return block_n, vmem_limit


@functools.partial(jax.jit, static_argnames=("reduce",))
def soft_cross_entropy(inputs, targets, *, reduce=True):
    """Pallas implementation of softCrossEntropy.forward."""
    N, C = inputs.shape
    assert targets.shape == (N, C)

    block_n, vmem_limit = _pick_tiling(
        N, C,
        jnp.dtype(inputs.dtype).itemsize,
        jnp.dtype(targets.dtype).itemsize,
        column_out=not reduce,
    )

    # Pad the sample axis so the grid divides evenly. Zero targets in padded
    # rows make their per-sample loss exactly 0, so results are unaffected.
    n_pad = _round_up(N, block_n)
    if n_pad != N:
        pad = ((0, n_pad - N), (0, 0))
        inputs_p = jnp.pad(inputs, pad)
        targets_p = jnp.pad(targets, pad)
    else:
        inputs_p, targets_p = inputs, targets
    grid = n_pad // block_n

    in_specs = [
        pl.BlockSpec((block_n, C), lambda i: (i, 0)),
        pl.BlockSpec((block_n, C), lambda i: (i, 0)),
    ]
    cparams = pltpu.CompilerParams(
        dimension_semantics=("parallel",),
        vmem_limit_bytes=vmem_limit,
    )

    if reduce:
        # One (8,128) f32 tile of (replicated) partial sum per grid step.
        partials = pl.pallas_call(
            _soft_ce_sum_kernel,
            out_shape=jax.ShapeDtypeStruct((grid * 8, 128), jnp.float32),
            grid_spec=pltpu.PrefetchScalarGridSpec(
                num_scalar_prefetch=0,
                grid=(grid,),
                in_specs=in_specs,
                out_specs=pl.BlockSpec((8, 128), lambda i: (i, 0)),
            ),
            compiler_params=cparams,
        )(inputs_p, targets_p)
        block_sums = partials.reshape(grid, 8, 128)[:, 0, 0]   # one scalar/block
        return jnp.sum(block_sums) / N                          # == torch sum/N

    per_sample = pl.pallas_call(
        _soft_ce_rows_kernel,
        out_shape=jax.ShapeDtypeStruct((n_pad, 1), jnp.float32),
        grid_spec=pltpu.PrefetchScalarGridSpec(
            num_scalar_prefetch=0,
            grid=(grid,),
            in_specs=in_specs,
            out_specs=pl.BlockSpec((block_n, 1), lambda i: (i, 0)),
        ),
        compiler_params=cparams,
    )(inputs_p, targets_p)
    return per_sample[:N, 0]                                    # [N]


def _reference(inputs, targets, reduce=True):
    log_likelihood = -jax.nn.log_softmax(inputs.astype(jnp.float32), axis=1)
    per_sample = jnp.sum(log_likelihood * targets.astype(jnp.float32), axis=1)
    if reduce:
        return jnp.sum(per_sample) / inputs.shape[0]
    return per_sample


if __name__ == "__main__":
    key = jax.random.PRNGKey(0)
    k1, k2, k3, k4 = jax.random.split(key, 4)

    # Small but lane-dense shapes: 64 samples, 128 classes (fills the 128-lane
    # vreg) -> block_n=16, grid=4 (exercises pipelining + the parallel axis).
    N, C = 64, 128
    inputs = jax.random.normal(k1, (N, C), dtype=jnp.float32)
    targets = jax.nn.softmax(jax.random.normal(k2, (N, C), dtype=jnp.float32), axis=1)

    loss_reduced = jax.block_until_ready(soft_cross_entropy(inputs, targets, reduce=True))
    loss_per_sample = jax.block_until_ready(soft_cross_entropy(inputs, targets, reduce=False))

    assert jnp.allclose(loss_reduced, _reference(inputs, targets, True), atol=1e-4, rtol=1e-4)
    assert jnp.allclose(loss_per_sample, _reference(inputs, targets, False), atol=1e-4, rtol=1e-4)

    # Exercise the padding path (N not a multiple of the tile) with bf16 inputs.
    N2 = 50
    inputs2 = jax.random.normal(k3, (N2, C), dtype=jnp.float32).astype(jnp.bfloat16)
    targets2 = jax.nn.softmax(jax.random.normal(k4, (N2, C), dtype=jnp.float32), axis=1)
    loss2 = jax.block_until_ready(soft_cross_entropy(inputs2, targets2, reduce=True))
    ref2 = _reference(inputs2.astype(jnp.float32), targets2, True)
    assert jnp.allclose(loss2, ref2, atol=2e-2, rtol=2e-2)   # bf16 input tolerance

    print("KERNEL_OK")
</pallas_src>

<mosaic_0001>
module attributes {stable_mosaic.version = 11 : i64} {
  func.func @_soft_ce_sum_kernel(%arg0: i32, %arg1: memref<16x128xf32, #tpu.memory_space<vmem>>, %arg2: memref<16x128xf32, #tpu.memory_space<vmem>>, %arg3: memref<8x128xf32, #tpu.memory_space<vmem>>) attributes {dimension_semantics = [#tpu.dimension_semantics<parallel>], iteration_bounds = array<i64: 4>, scalar_prefetch = 0 : i64, scratch_operands = 0 : i64, tpu.core_type = #tpu.core_type<tc>, window_params = [{transform_indices = @transform_0, window_bounds = array<i64: 16, 128>}, {transform_indices = @transform_1, window_bounds = array<i64: 16, 128>}, {transform_indices = @transform_2, window_bounds = array<i64: 8, 128>}]} {
    %c0 = arith.constant 0 : index
    %c0_0 = arith.constant 0 : index
    %0 = vector.load %arg1[%c0, %c0_0] : memref<16x128xf32, #tpu.memory_space<vmem>>, vector<16x128xf32>
    %c0_1 = arith.constant 0 : index
    %c0_2 = arith.constant 0 : index
    %1 = vector.load %arg2[%c0_1, %c0_2] : memref<16x128xf32, #tpu.memory_space<vmem>>, vector<16x128xf32>
    %cst = arith.constant dense<0xFF800000> : vector<16xf32>
    %2 = vector.multi_reduction <maximumf>, %0, %cst [1] : vector<16x128xf32> to vector<16xf32>
    %3 = vector.shape_cast %2 : vector<16xf32> to vector<16x1xf32>
    %4 = vector.broadcast %3 : vector<16x1xf32> to vector<16x128xf32>
    %5 = arith.subf %0, %4 : vector<16x128xf32>
    %6 = math.exp %5 : vector<16x128xf32>
    %cst_3 = arith.constant dense<0.000000e+00> : vector<16xf32>
    %7 = vector.multi_reduction <add>, %6, %cst_3 [1] : vector<16x128xf32> to vector<16xf32>
    %8 = vector.shape_cast %7 : vector<16xf32> to vector<16x1xf32>
    %9 = math.log %8 : vector<16x1xf32>
    %cst_4 = arith.constant dense<0.000000e+00> : vector<16xf32>
    %10 = vector.multi_reduction <add>, %1, %cst_4 [1] : vector<16x128xf32> to vector<16xf32>
    %11 = vector.shape_cast %10 : vector<16xf32> to vector<16x1xf32>
    %12 = arith.mulf %9, %11 : vector<16x1xf32>
    %13 = vector.shape_cast %12 : vector<16x1xf32> to vector<1x16x1xf32>
    %cst_5 = arith.constant dense<0.000000e+00> : vector<1xf32>
    %14 = vector.multi_reduction <add>, %13, %cst_5 [1, 2] : vector<1x16x1xf32> to vector<1xf32>
    %15 = vector.shape_cast %14 : vector<1xf32> to vector<1x1x1xf32>
    %16 = vector.extract %15[0, 0, 0] : f32 from vector<1x1x1xf32>
    %17 = arith.mulf %1, %5 : vector<16x128xf32>
    %18 = vector.shape_cast %17 : vector<16x128xf32> to vector<1x16x128xf32>
    %cst_6 = arith.constant dense<0.000000e+00> : vector<1xf32>
    %19 = vector.multi_reduction <add>, %18, %cst_6 [1, 2] : vector<1x16x128xf32> to vector<1xf32>
    %20 = vector.shape_cast %19 : vector<1xf32> to vector<1x1x1xf32>
    %21 = vector.extract %20[0, 0, 0] : f32 from vector<1x1x1xf32>
    %22 = arith.subf %16, %21 : f32
    %23 = vector.broadcast %22 : f32 to vector<8x128xf32>
    %c0_7 = arith.constant 0 : index
    %c0_8 = arith.constant 0 : index
    %24 = vector.load %arg3[%c0_7, %c0_8] : memref<8x128xf32, #tpu.memory_space<vmem>>, vector<8x128xf32>
    tpu.vector_store %arg3[%c0_7, %c0_8], %23 {strides = array<i32>} : memref<8x128xf32, #tpu.memory_space<vmem>>, vector<8x128xf32>,
    return
  }
  func.func @transform_0(%arg0: i32) -> (i32, i32) {
    %c0_i32 = arith.constant 0 : i32
    %c0_i32_0 = arith.constant 0 : i32
    return %arg0, %c0_i32 : i32, i32
  }
  func.func @transform_1(%arg0: i32) -> (i32, i32) {
    %c0_i32 = arith.constant 0 : i32
    %c0_i32_0 = arith.constant 0 : i32
    return %arg0, %c0_i32 : i32, i32
  }
  func.func @transform_2(%arg0: i32) -> (i32, i32) {
    %c0_i32 = arith.constant 0 : i32
    %c0_i32_0 = arith.constant 0 : i32
    return %arg0, %c0_i32 : i32, i32
  }
}

</mosaic_0001>

<llo_original>
// kernel: soft_cross_entropy.1
$region0: #{soft_cross_entropy.1}
  #allocation0 [shape = 'u32[]', space=smem, size = 0x4, offset = 0x4, fixed_abs, tag = 'smem constant byte address 0x4 - core index']
  #allocation1 [shape = 'u32[144,128]{1,0:T(1,128)}', space=vmem, size = 0x12000, scoped, tag = 'internal scratch']
  %s0 = inlined_call_operand.hbm [shape: f32[64,128], index: 0, kind: input, shape index: {}]
  %s1 = inlined_call_operand.hbm [shape: f32[64,128], index: 1, kind: input, shape index: {}]
  %s2 = inlined_call_operand.vmem [shape: f32[32,128], index: 2, kind: output, shape index: {}]
  %s3 = sld [smem:[#allocation0]]
  $region49: #{soft_cross_entropy.1} parent=0
    _
  %s5 = ssub.s32 1, %s3
  %s6 = scalar_select 0, %s5, %s3
  $region1: #{soft_cross_entropy.1} parent=0
    #allocation2 [shape = 'u8[16384]{0}', space=vmem, size = 0x4000, scoped, tag = 'input window, operand 0']
    #allocation3 [shape = 's32[2]{0}', space=sflag, size = 0x8, scoped, tag = 'scoped memory for soft_cross_entropy.1']
    #allocation4 [shape = 'u8[16384]{0}', space=vmem, size = 0x4000, scoped, tag = 'input window, operand 1']
    #allocation5 [shape = 's32[2]{0}', space=sflag, size = 0x8, scoped, tag = 'scoped memory for soft_cross_entropy.1']
    %7 = vsyncpa [#allocation3], 0
    %s8 = scalar_lea.sflag [#allocation3], 1
    %9 = vsyncpa %s8, 0
    %10 = vsyncpa [#allocation5], 0
    %s11 = scalar_lea.sflag [#allocation5], 1
    %12 = vsyncpa %s11, 0
    loop: start=0, step=1, limit=6
    $region2: #{soft_cross_entropy.1} parent=1 // loop_pre_header
      _
    $region3: #{soft_cross_entropy.1} parent=1 // loop_header
      %s14 = sphi 0, %s18
      %p15 = scmp.ge.s32.totalorder %s14, 6
      %s24 = sphi 0, %s26
      %s27 = sphi 0, %s24
      %s28 = sphi 0, %s27
      %s44 = sphi 0, %s28
      %s50 = sphi 0, %s52
      %s53 = sphi 0, %s50
      %s54 = sphi 0, %s53
      %s70 = sphi 0, %s54
      %s76 = sphi 0, %s78
      %s79 = sphi 0, %s76
      %s80 = sphi 0, %s79
      %s96 = sphi 0, %s80
    $region4: #{soft_cross_entropy.1} parent=1 // loop_header_branch
      %17 = sbr.rel (%p15) target = $region8
    $region5: #{soft_cross_entropy.1} parent=1 // loop_body
      %s19 = ssub.s32 %s14, 1
      %s20 = ssub.s32 %s14, 2
      %s21 = sadd.s32 %s14, 1
      %s22 = ssub.s32 %s14, %s21
      %p23 = scmp.eq.s32.totalorder %s22, 0
      %s25 = sadd.s32 %s24, 1
      %s26 = scalar_select %p23, %s24, %s25
      %p29 = pneg %p23
      %p30 = scmp.eq.s32.totalorder %s14, 3
      %p31 = por %p29, %p30
      %p32 = scmp.ne.s32.totalorder %s24, %s27
      %p33 = scmp.eq.s32.totalorder %s14, 0
      %p34 = por %p32, %p33
      %p35 = scmp.ne.s32.totalorder %s24, %s27
      %p36 = scmp.eq.s32.totalorder %s19, 3
      %p37 = por %p35, %p36
      %p38 = scmp.ne.s32.totalorder %s27, %s28
      %p39 = scmp.eq.s32.totalorder %s19, 0
      %p40 = por %p38, %p39
      %p41 = scmp.ne.s32.totalorder %s27, %s28
      %p42 = scmp.eq.s32.totalorder %s20, 3
      %p43 = por %p41, %p42
      %p45 = scmp.ne.s32.totalorder %s28, %s44
      %p46 = scmp.eq.s32.totalorder %s20, 0
      %p47 = por %p45, %p46
      %s48 = ssub.s32 %s14, %s21
      %p49 = scmp.eq.s32.totalorder %s48, 0
      %s51 = sadd.s32 %s50, 1
      %s52 = scalar_select %p49, %s50, %s51
      %p55 = pneg %p49
      %p56 = scmp.eq.s32.totalorder %s14, 3
      %p57 = por %p55, %p56
      %p58 = scmp.ne.s32.totalorder %s50, %s53
      %p59 = scmp.eq.s32.totalorder %s14, 0
      %p60 = por %p58, %p59
      %p61 = scmp.ne.s32.totalorder %s50, %s53
      %p62 = scmp.eq.s32.totalorder %s19, 3
      %p63 = por %p61, %p62
      %p64 = scmp.ne.s32.totalorder %s53, %s54
      %p65 = scmp.eq.s32.totalorder %s19, 0
      %p66 = por %p64, %p65
      %p67 = scmp.ne.s32.totalorder %s53, %s54
      %p68 = scmp.eq.s32.totalorder %s20, 3
      %p69 = por %p67, %p68
      %p71 = scmp.ne.s32.totalorder %s54, %s70
      %p72 = scmp.eq.s32.totalorder %s20, 0
      %p73 = por %p71, %p72
      %s74 = ssub.s32 %s14, %s21
      %p75 = scmp.eq.s32.totalorder %s74, 0
      %s77 = sadd.s32 %s76, 1
      %s78 = scalar_select %p75, %s76, %s77
      %p81 = pneg %p75
      %p82 = scmp.eq.s32.totalorder %s14, 3
      %p83 = por %p81, %p82
      %p84 = scmp.ne.s32.totalorder %s76, %s79
      %p85 = scmp.eq.s32.totalorder %s14, 0
      %p86 = por %p84, %p85
      %p87 = scmp.ne.s32.totalorder %s76, %s79
      %p88 = scmp.eq.s32.totalorder %s19, 3
      %p89 = por %p87, %p88
      %p90 = scmp.ne.s32.totalorder %s79, %s80
      %p91 = scmp.eq.s32.totalorder %s19, 0
      %p92 = por %p90, %p91
      %p93 = scmp.ne.s32.totalorder %s79, %s80
      %p94 = scmp.eq.s32.totalorder %s20, 3
      %p95 = por %p93, %p94
      %p97 = scmp.ne.s32.totalorder %s80, %s96
      %p98 = scmp.eq.s32.totalorder %s20, 0
      %p99 = por %p97, %p98
      %p100 = scmp.le.s32.totalorder 1, %s14
      %p101 = scmp.lt.s32.totalorder %s14, 5
      %p102 = pnand %p100, %p101
      %p103 = pneg %p102
      // Predicated region
      $region9: #{soft_cross_entropy.1} parent=5 // pred_check
        _
      $region10: #{soft_cross_entropy.1} parent=5 // pred_check_branch
        %105 = sbr.rel (%p102) target = $region12
      $region11: #{soft_cross_entropy.1} parent=5 // pred_region
        %s106 = ssub.s32 %s14, 1
      $region12: #{soft_cross_entropy.1} parent=5 // pred_fallthru
        _
      %p107 = scmp.lt.s32.totalorder %s14, 4
      // Predicated region
      $region13: #{soft_cross_entropy.1} parent=5 // pred_check
        %p108 = pneg %p107
      $region14: #{soft_cross_entropy.1} parent=5 // pred_check_branch
        %110 = sbr.rel (%p108) target = $region16
      $region15: #{soft_cross_entropy.1} parent=5 // pred_region
        // Predicated region
        $region17: #{soft_cross_entropy.1} parent=15 // pred_check
          %p111 = pneg %p34
        $region18: #{soft_cross_entropy.1} parent=15 // pred_check_branch
          %113 = sbr.rel (%p111) target = $region20
        $region19: #{soft_cross_entropy.1} parent=15 // pred_region
          %s114 = sand.u32 %s24, 1
          %s115 = scalar_lea.sflag [#allocation3], %s114
          %s116 = sand.u32 %s24, 1
          %s117 = smul.addr %s116, 16
          %s118 = scalar_lea.vmem [#allocation2], %s117
          %s119 = smul.u32 2, %s14
          %s121 = ssub.s32 256, 256
          %122 = vsyncadd %s115, %s121
          %s123 = smul.addr %s119, 128
          %s124 = scalar_lea.hbm %s0, %s123
          %s125 = sshll.u32 %s118, 4
          %s126 = int_to_ptr.vmem [resolvable:$true] %s125
          %131 = dma.hbm_to_vmem [thread:$0]  %s124, 256, %s126, %s115, 128, 128, 8
        $region20: #{soft_cross_entropy.1} parent=15 // pred_fallthru
          _
        // Predicated region
        $region21: #{soft_cross_entropy.1} parent=15 // pred_check
          %p132 = pneg %p60
        $region22: #{soft_cross_entropy.1} parent=15 // pred_check_branch
          %134 = sbr.rel (%p132) target = $region24
        $region23: #{soft_cross_entropy.1} parent=15 // pred_region
          %s135 = sand.u32 %s50, 1
          %s136 = scalar_lea.sflag [#allocation5], %s135
          %s137 = sand.u32 %s50, 1
          %s138 = smul.addr %s137, 16
          %s139 = scalar_lea.vmem [#allocation4], %s138
          %s140 = smul.u32 2, %s14
          %s142 = ssub.s32 256, 256
          %143 = vsyncadd %s136, %s142
          %s144 = smul.addr %s140, 128
          %s145 = scalar_lea.hbm %s1, %s144
          %s146 = sshll.u32 %s139, 4
          %s147 = int_to_ptr.vmem [resolvable:$true] %s146
          %152 = dma.hbm_to_vmem [thread:$0]  %s145, 256, %s147, %s136, 128, 128, 8
        $region24: #{soft_cross_entropy.1} parent=15 // pred_fallthru
          _
      $region16: #{soft_cross_entropy.1} parent=5 // pred_fallthru
        _
      %p153 = scmp.le.s32.totalorder 1, %s14
      %p154 = scmp.lt.s32.totalorder %s14, 5
      %p155 = pnand %p153, %p154
      %p156 = pneg %p155
      // Predicated region
      $region25: #{soft_cross_entropy.1} parent=5 // pred_check
        _
      $region26: #{soft_cross_entropy.1} parent=5 // pred_check_branch
        %158 = sbr.rel (%p155) target = $region28
      $region27: #{soft_cross_entropy.1} parent=5 // pred_region
        %s159 = ssub.s32 %s14, 1
        %s160 = sand.u32 %s27, 1
        %s161 = scalar_lea.sflag [#allocation3], %s160
        %s162 = sand.u32 %s27, 1
        %s163 = smul.addr %s162, 16
        %s164 = scalar_lea.vmem [#allocation2], %s163
        // Predicated region
        $region29: #{soft_cross_entropy.1} parent=27 // pred_check
          %p165 = pneg %p40
        $region30: #{soft_cross_entropy.1} parent=27 // pred_check_branch
          %167 = sbr.rel (%p165) target = $region32
        $region31: #{soft_cross_entropy.1} parent=27 // pred_region
          %168 = dma.done %s161, 256
        $region32: #{soft_cross_entropy.1} parent=27 // pred_fallthru
          _
        %s169 = sand.u32 %s53, 1
        %s170 = scalar_lea.sflag [#allocation5], %s169
        %s171 = sand.u32 %s53, 1
        %s172 = smul.addr %s171, 16
        %s173 = scalar_lea.vmem [#allocation4], %s172
        // Predicated region
        $region33: #{soft_cross_entropy.1} parent=27 // pred_check
          %p174 = pneg %p66
        $region34: #{soft_cross_entropy.1} parent=27 // pred_check_branch
          %176 = sbr.rel (%p174) target = $region36
        $region35: #{soft_cross_entropy.1} parent=27 // pred_region
          %177 = dma.done %s170, 256
        $region36: #{soft_cross_entropy.1} parent=27 // pred_fallthru
          _
        %s178 = sand.u32 %s27, 1
        %s179 = scalar_lea.sflag [#allocation3], %s178
        %s180 = sand.u32 %s27, 1
        %s181 = smul.addr %s180, 16
        %s182 = scalar_lea.vmem [#allocation2], %s181
        %p183 = pneg %p40
        %p184 = pneg %p37
        %s185 = sand.u32 %s53, 1
        %s186 = scalar_lea.sflag [#allocation5], %s185
        %s187 = sand.u32 %s53, 1
        %s188 = smul.addr %s187, 16
        %s189 = scalar_lea.vmem [#allocation4], %s188
        %p190 = pneg %p66
        %p191 = pneg %p63
        %p192 = pneg %p92
        %p193 = pneg %p89
        %p194 = scmp.lt.s32.totalorder %s19, 3
        %s195 = scalar_select %p194, %s19, 3
        %s196 = smul.addr %s195, 8
        %s197 = scalar_lea.vmem %s2, %s196
        %s198 = smul.u32 2, %s19
        %s199 = smul.u32 2, %s19
        %p200 = scmp.lt.s32.totalorder %s19, 3
        %s201 = scalar_select %p200, %s19, 3
        %s202 = smul.addr %s201, 8
        %s203 = scalar_lea.vmem %s2, %s202
        %v204 = vld [vmem:[%s164] sm:$0xff]
        %v205 = vld [vmem:[%s164 + $0x8] sm:$0xff]
        %v206 = vld [vmem:[%s173] sm:$0xff]
        %v207 = vld [vmem:[%s173 + $0x8] sm:$0xff]
        %208 = vmax.xlane.f32.xlu0 %v204
        %v209 = vpop.xlane.xlu0 %208
        %210 = vmax.xlane.f32.xlu0 %v205
        %v211 = vpop.xlane.xlu0 %210
        %v212 = vsub.f32 %v204, %v209
        %v213 = vsub.f32 %v205, %v211
        %v214 = vmul.f32 %v212, 1.442695
        %v215 = vpow.pop %v214
        %v216 = vmul.f32 %v213, 1.442695
        %v217 = vpow.pop %v216
        %218 = vadd.xlane.f32.xlu0 %v215
        %v219 = vpop.xlane.xlu0 %218
        %220 = vadd.xlane.f32.xlu0 %v217
        %v221 = vpop.xlane.xlu0 %220
        %v222 = vlog2.pop %v219
        %v223 = vmul.f32 %v222, 0.6931472
        %v224 = vlog2.pop %v221
        %v225 = vmul.f32 %v224, 0.6931472
        %226 = vadd.xlane.f32.xlu0 %v206
        %v227 = vpop.xlane.xlu0 %226
        %228 = vadd.xlane.f32.xlu0 %v207
        %v229 = vpop.xlane.xlu0 %228
        %v230 = vmul.f32 %v223, %v227
        %v231 = vmul.f32 %v225, %v229
        %vm232 = vcmask 7168
        %v233 = vsel %vm232, %v230, 0.0
        %v234 = vsel %vm232, %v231, 0.0
        %v235 = vadd.f32 %v233, %v234
        %236 = vadd.xlane.f32.xlu0 %v235
        %v237 = vpop.xlane.xlu0 %236
        %v238 = vrot.slane %v237, 4
        %v239 = vadd.f32 %v237, %v238
        %v240 = vrot.slane %v239, 2
        %v241 = vadd.f32 %v239, %v240
        %v242 = vrot.slane %v241, 1
        %v243 = vadd.f32 %v241, %v242
        %s244 = vtos %v243
        %v245 = vmul.f32 %v206, %v212
        %v246 = vmul.f32 %v207, %v213
        %v247 = vadd.f32 %v245, %v246
        %248 = vadd.xlane.f32.xlu0 %v247
        %v249 = vpop.xlane.xlu0 %248
        %v250 = vrot.slane %v249, 4
        %v251 = vadd.f32 %v249, %v250
        %v252 = vrot.slane %v251, 2
        %v253 = vadd.f32 %v251, %v252
        %v254 = vrot.slane %v253, 1
        %v255 = vadd.f32 %v253, %v254
        %s256 = vtos %v255
        %s257 = ssub.f32 %s244, %s256
        %v258 = vstv %s257
        %259 = vst [vmem:[%s203] sm:$0xff] %v258
        %p260 = scmp.lt.s32.totalorder %s19, 3
        %s261 = scalar_select %p260, %s19, 3
        %s262 = smul.addr %s261, 8
        %s263 = scalar_lea.vmem %s2, %s262
        // Predicated region
        $region37: #{soft_cross_entropy.1} parent=27 // pred_check
          %p264 = pneg %p89
        $region38: #{soft_cross_entropy.1} parent=27 // pred_check_branch
          %266 = sbr.rel (%p264) target = $region40
        $region39: #{soft_cross_entropy.1} parent=27 // pred_region
          _
        $region40: #{soft_cross_entropy.1} parent=27 // pred_fallthru
          _
      $region28: #{soft_cross_entropy.1} parent=5 // pred_fallthru
        _
      %p267 = scmp.le.s32.totalorder 2, %s14
      // Predicated region
      $region41: #{soft_cross_entropy.1} parent=5 // pred_check
        %p268 = pneg %p267
      $region42: #{soft_cross_entropy.1} parent=5 // pred_check_branch
        %270 = sbr.rel (%p268) target = $region44
      $region43: #{soft_cross_entropy.1} parent=5 // pred_region
        %s271 = ssub.s32 %s14, 2
        // Predicated region
        $region45: #{soft_cross_entropy.1} parent=43 // pred_check
          %p272 = pneg %p95
        $region46: #{soft_cross_entropy.1} parent=43 // pred_check_branch
          %274 = sbr.rel (%p272) target = $region48
        $region47: #{soft_cross_entropy.1} parent=43 // pred_region
          %p275 = scmp.lt.s32.totalorder %s20, 3
          %s276 = scalar_select %p275, %s20, 3
          %s277 = smul.addr %s276, 8
          %s278 = scalar_lea.vmem %s2, %s277
        $region48: #{soft_cross_entropy.1} parent=43 // pred_fallthru
          _
      $region44: #{soft_cross_entropy.1} parent=5 // pred_fallthru
        _
    $region6: #{soft_cross_entropy.1} parent=1 // loop_footer
      %s18 = sadd.s32 1, %s14
    $region7: #{soft_cross_entropy.1} parent=1 // loop_footer_branch
      %13 = sbr.rel target = $region3
    $region8: #{soft_cross_entropy.1} parent=1 // loop_exit
      _
    %279 = vsyncpa [#allocation3], 1
    %s280 = scalar_lea.sflag [#allocation3], 1
    %281 = vsyncpa %s280, 1
    %282 = vsyncpa [#allocation5], 1
    %s283 = scalar_lea.sflag [#allocation5], 1
    %284 = vsyncpa %s283, 1

</llo_original>
